<compile_context>
chip_gen: v5e
topology: v5e:2x2
jax: 0.10.0
libtpu: 0.0.40
codegen_flags: <defaults>
</compile_context>

<pallas_src>
import functools

import jax
import jax.numpy as jnp
from jax.experimental import pallas as pl
from jax.experimental.pallas import tpu as pltpu

BN_EPS = 1e-5


def _round_up(x, m):
    return (x + m - 1) // m * m


def _predictor_loss_kernel(
    z_ref, t_ref,
    w1_ref, b1_ref, g1_ref, beta1_ref,
    w2_ref, b2_ref, g2_ref, beta2_ref,
    w3_ref, b3_ref,
    out_ref,
    x_acc,
    *, rows_last,
):
    t = pl.program_id(0)
    nt = pl.num_programs(0)
    t_tile = z_ref.shape[1]

    # ---- init the streaming accumulator on the first T-tile ----
    @pl.when(t == 0)
    def _():
        x_acc[...] = jnp.zeros_like(x_acc)

    def tile_sum():
        # f32 input -> astype is a no-op; bf16 callers get an f32 accumulate.
        return jnp.sum(z_ref[...].astype(jnp.float32), axis=1)

    # ---- streamed z.sum(1): accumulate this T-tile in f32 ----
    if rows_last == t_tile:
        # T divides evenly: no masking anywhere (static fast path).
        x_acc[...] += tile_sum()
    else:
        @pl.when(t < nt - 1)
        def _():
            x_acc[...] += tile_sum()

        @pl.when(t == nt - 1)
        def _():
            # Ragged tail: mask rows past the true T (OOB block content is
            # unspecified, so it must be zeroed before the reduction).
            row = jax.lax.broadcasted_iota(jnp.int32, (1, t_tile, 1), 1)
            zt = jnp.where(row < rows_last, z_ref[...].astype(jnp.float32), 0.0)
            x_acc[...] += jnp.sum(zt, axis=1)

    # ---- MLP + MSE once the reduction over T is complete ----
    @pl.when(t == nt - 1)
    def _():
        x = x_acc[...]                                         # (B, D) f32

        def bn_relu(h, gamma, beta):
            # Two-pass training-mode batch stats (biased variance), which is
            # numerically robust and matches nn.BatchNorm1d in training mode.
            mu = jnp.mean(h, axis=0, keepdims=True)
            d = h - mu
            var = jnp.mean(d * d, axis=0, keepdims=True)
            h = gamma * d * jax.lax.rsqrt(var + BN_EPS) + beta
            return jnp.maximum(h, 0.0)

        # NOTE: default MXU precision (the pure-JAX reference uses HIGHEST);
        # agreement is well within rtol=5e-3 for f32 inputs.
        h = jnp.dot(x, w1_ref[...], preferred_element_type=jnp.float32) + b1_ref[...]
        h = bn_relu(h, g1_ref[...], beta1_ref[...])

        h = jnp.dot(h, w2_ref[...], preferred_element_type=jnp.float32) + b2_ref[...]
        h = bn_relu(h, g2_ref[...], beta2_ref[...])

        pred = jnp.dot(h, w3_ref[...], preferred_element_type=jnp.float32) + b3_ref[...]

        diff = pred - t_ref[...]
        out_ref[0, 0] = jnp.mean(diff * diff)


def inverse_grad_speaker_predictor_loss(
    z, targets, params, *, t_tile=None,
    vmem_buffer_bytes=12 * 1024 * 1024,
    vmem_limit_bytes=32 * 1024 * 1024,
):
    """z: (B, T, D) or (B, D); targets: (B, target_dim). Returns scalar f32 loss."""
    if z.ndim == 2:
        z = z[:, None, :]                     # T = 1; streamed sum is a no-op
    B, T, D = z.shape
    w1, b1, g1, be1, w2, b2, g2, be2, w3, b3 = params
    targets = targets.astype(jnp.float32)

    # ---- T-tile sizing ----
    # One (B, t_tile, D) f32 pipeline buffer occupies B*t_tile*round_up(D,128)*4
    # bytes of VMEM (the lane dim is padded on-chip), even though the DMA only
    # moves B*t_tile*D*4 bytes of HBM.  Cap the *VMEM* footprint at ~12 MiB so
    # 2-deep buffering + ~0.6 MiB resident params fit the 32 MiB limit on every
    # generation (v7x physical VMEM is 64 MiB, so do not raise the limit there).
    lane_bytes = _round_up(D, 128) * 4
    cap_rows = max(8, (vmem_buffer_bytes // (B * lane_bytes)) // 8 * 8)
    if t_tile is None:
        t_tile = min(_round_up(T, 8), cap_rows)
    t_tile = max(8, min(_round_up(t_tile, 8), cap_rows))

    num_t = pl.cdiv(T, t_tile)
    rows_last = T - (num_t - 1) * t_tile      # valid rows in the last tile

    # z is passed straight through: no pad, no cast, no host-side copy.
    operands = (z, targets, w1, b1, g1, be1, w2, b2, g2, be2, w3, b3)

    def resident(shape):
        # Whole-array block, constant block index -> stays VMEM-resident.
        # (Total resident params ~0.6 MiB even double-buffered; pl.Buffered(1)
        # would reclaim ~0.3 MiB but is unnecessary at this headroom.)
        return pl.BlockSpec(shape, lambda t: (0,) * len(shape))

    in_specs = [pl.BlockSpec((B, t_tile, D), lambda t: (0, t, 0))]
    in_specs += [resident(op.shape) for op in operands[1:]]

    kernel = functools.partial(_predictor_loss_kernel, rows_last=rows_last)

    out = pl.pallas_call(
        kernel,
        out_shape=jax.ShapeDtypeStruct((1, 1), jnp.float32),
        grid_spec=pltpu.PrefetchScalarGridSpec(
            num_scalar_prefetch=0,
            grid=(num_t,),
            in_specs=in_specs,
            out_specs=pl.BlockSpec((1, 1), lambda t: (0, 0),
                                   memory_space=pltpu.MemorySpace.SMEM),
            scratch_shapes=[pltpu.VMEM((B, D), jnp.float32)],
        ),
        compiler_params=pltpu.CompilerParams(
            dimension_semantics=("arbitrary",),
            vmem_limit_bytes=vmem_limit_bytes,
        ),
    )(*operands)
    return out[0, 0]


def init_params(key, input_dim, target_dim, hidden_dim=256):
    """Deterministic parameter init. Linear weights returned as (in, out)."""
    ks = jax.random.split(key, 6)

    def linear(kw, kb, fan_in, fan_out):
        bound = 1.0 / jnp.sqrt(fan_in)
        w = jax.random.uniform(kw, (fan_in, fan_out), jnp.float32, -bound, bound)
        b = jax.random.uniform(kb, (1, fan_out), jnp.float32, -bound, bound)
        return w, b

    w1, b1 = linear(ks[0], ks[1], input_dim, hidden_dim)
    w2, b2 = linear(ks[2], ks[3], hidden_dim, hidden_dim)
    w3, b3 = linear(ks[4], ks[5], hidden_dim, target_dim)

    g1 = jnp.ones((1, hidden_dim), jnp.float32)    # BN gamma
    be1 = jnp.zeros((1, hidden_dim), jnp.float32)  # BN beta
    g2 = jnp.ones((1, hidden_dim), jnp.float32)
    be2 = jnp.zeros((1, hidden_dim), jnp.float32)

    return (w1, b1, g1, be1, w2, b2, g2, be2, w3, b3)


def _reference_loss(z, targets, params):
    """Pure-JAX forward mirroring the PyTorch module (f32 throughout)."""
    (w1, b1, g1, be1, w2, b2, g2, be2, w3, b3) = params
    x = jnp.sum(z.astype(jnp.float32), axis=1) if z.ndim == 3 else z.astype(jnp.float32)
    hi = jax.lax.Precision.HIGHEST

    def bn_relu(h, g, beta):
        mu = jnp.mean(h, axis=0, keepdims=True)
        var = jnp.mean((h - mu) ** 2, axis=0, keepdims=True)
        return jnp.maximum(g * (h - mu) * jax.lax.rsqrt(var + BN_EPS) + beta, 0.0)

    h = bn_relu(jnp.dot(x, w1, precision=hi) + b1, g1, be1)
    h = bn_relu(jnp.dot(h, w2, precision=hi) + b2, g2, be2)
    pred = jnp.dot(h, w3, precision=hi) + b3
    return jnp.mean((pred - targets) ** 2)


if __name__ == "__main__":
    # T=37 with t_tile=8 -> 5 grid steps: 4 full tiles + a ragged 5-row tile,
    # exercising both the streamed accumulation and the in-kernel tail mask.
    B, T, INPUT_DIM, HIDDEN_DIM, TARGET_DIM = 4, 37, 32, 256, 8

    key = jax.random.PRNGKey(0)
    kz, kt, kp = jax.random.split(key, 3)

    z = jax.random.normal(kz, (B, T, INPUT_DIM), jnp.float32)
    targets = jax.random.normal(kt, (B, TARGET_DIM), jnp.float32)
    params = init_params(kp, INPUT_DIM, TARGET_DIM, HIDDEN_DIM)

    loss = inverse_grad_speaker_predictor_loss(z, targets, params, t_tile=8)
    jax.block_until_ready(loss)

    assert loss.shape == () and loss.dtype == jnp.float32

    ref = _reference_loss(z, targets, params)
    jax.block_until_ready(ref)
    assert jnp.allclose(loss, ref, rtol=5e-3, atol=1e-3), (loss, ref)

    print("KERNEL_OK")
</pallas_src>

<mosaic_0001>
module attributes {stable_mosaic.version = 11 : i64} {
  func.func @_predictor_loss_kernel(%arg0: i32, %arg1: memref<4x8x32xf32, #tpu.memory_space<vmem>>, %arg2: memref<4x8xf32, #tpu.memory_space<vmem>>, %arg3: memref<32x256xf32, #tpu.memory_space<vmem>>, %arg4: memref<1x256xf32, #tpu.memory_space<vmem>>, %arg5: memref<1x256xf32, #tpu.memory_space<vmem>>, %arg6: memref<1x256xf32, #tpu.memory_space<vmem>>, %arg7: memref<256x256xf32, #tpu.memory_space<vmem>>, %arg8: memref<1x256xf32, #tpu.memory_space<vmem>>, %arg9: memref<1x256xf32, #tpu.memory_space<vmem>>, %arg10: memref<1x256xf32, #tpu.memory_space<vmem>>, %arg11: memref<256x8xf32, #tpu.memory_space<vmem>>, %arg12: memref<1x8xf32, #tpu.memory_space<vmem>>, %arg13: memref<1x1xf32, #tpu.memory_space<smem>>, %arg14: memref<4x32xf32, #tpu.memory_space<vmem>>) attributes {dimension_semantics = [#tpu.dimension_semantics<arbitrary>], iteration_bounds = array<i64: 5>, scalar_prefetch = 0 : i64, scratch_operands = 1 : i64, tpu.core_type = #tpu.core_type<tc>, window_params = [{transform_indices = @transform_0, window_bounds = array<i64: 4, 8, 32>}, {pipeline_mode = #tpu.pipeline_mode<synchronous>, transform_indices = @transform_1, window_bounds = array<i64: 4, 8>}, {pipeline_mode = #tpu.pipeline_mode<synchronous>, transform_indices = @transform_2, window_bounds = array<i64: 32, 256>}, {pipeline_mode = #tpu.pipeline_mode<synchronous>, transform_indices = @transform_3, window_bounds = array<i64: 1, 256>}, {pipeline_mode = #tpu.pipeline_mode<synchronous>, transform_indices = @transform_4, window_bounds = array<i64: 1, 256>}, {pipeline_mode = #tpu.pipeline_mode<synchronous>, transform_indices = @transform_5, window_bounds = array<i64: 1, 256>}, {pipeline_mode = #tpu.pipeline_mode<synchronous>, transform_indices = @transform_6, window_bounds = array<i64: 256, 256>}, {pipeline_mode = #tpu.pipeline_mode<synchronous>, transform_indices = @transform_7, window_bounds = array<i64: 1, 256>}, {pipeline_mode = #tpu.pipeline_mode<synchronous>, transform_indices = @transform_8, window_bounds = array<i64: 1, 256>}, {pipeline_mode = #tpu.pipeline_mode<synchronous>, transform_indices = @transform_9, window_bounds = array<i64: 1, 256>}, {pipeline_mode = #tpu.pipeline_mode<synchronous>, transform_indices = @transform_10, window_bounds = array<i64: 256, 8>}, {pipeline_mode = #tpu.pipeline_mode<synchronous>, transform_indices = @transform_11, window_bounds = array<i64: 1, 8>}, {transform_indices = @transform_12, window_bounds = array<i64: 1, 1>}]} {
    %c0_i32 = arith.constant 0 : i32
    %0 = arith.cmpi eq, %arg0, %c0_i32 : i32
    %1 = arith.extui %0 : i1 to i32
    %c0_i32_0 = arith.constant 0 : i32
    %2 = arith.cmpi ne, %1, %c0_i32_0 : i32
    scf.if %2 {
      %cst = arith.constant 0.000000e+00 : f32
      %12 = vector.broadcast %cst : f32 to vector<4x32xf32>
      %c0 = arith.constant 0 : index
      %c0_6 = arith.constant 0 : index
      %13 = vector.load %arg14[%c0, %c0_6] : memref<4x32xf32, #tpu.memory_space<vmem>>, vector<4x32xf32>
      tpu.vector_store %arg14[%c0, %c0_6], %12 {strides = array<i32>} : memref<4x32xf32, #tpu.memory_space<vmem>>, vector<4x32xf32>,
    } else {
    }
    %c4_i32 = arith.constant 4 : i32
    %3 = arith.cmpi slt, %arg0, %c4_i32 : i32
    %4 = arith.extui %3 : i1 to i32
    %c0_i32_1 = arith.constant 0 : i32
    %5 = arith.cmpi ne, %4, %c0_i32_1 : i32
    scf.if %5 {
      %c0 = arith.constant 0 : index
      %c0_6 = arith.constant 0 : index
      %12 = vector.load %arg14[%c0, %c0_6] : memref<4x32xf32, #tpu.memory_space<vmem>>, vector<4x32xf32>
      %c0_7 = arith.constant 0 : index
      %c0_8 = arith.constant 0 : index
      %c0_9 = arith.constant 0 : index
      %13 = vector.load %arg1[%c0_7, %c0_8, %c0_9] : memref<4x8x32xf32, #tpu.memory_space<vmem>>, vector<4x8x32xf32>
      %cst = arith.constant dense<0.000000e+00> : vector<4x32xf32>
      %14 = vector.multi_reduction <add>, %13, %cst [1] : vector<4x8x32xf32> to vector<4x32xf32>
      %15 = arith.addf %12, %14 : vector<4x32xf32>
      %c0_10 = arith.constant 0 : index
      %c0_11 = arith.constant 0 : index
      %16 = vector.load %arg14[%c0_10, %c0_11] : memref<4x32xf32, #tpu.memory_space<vmem>>, vector<4x32xf32>
      tpu.vector_store %arg14[%c0_10, %c0_11], %15 {strides = array<i32>} : memref<4x32xf32, #tpu.memory_space<vmem>>, vector<4x32xf32>,
    } else {
    }
    %c4_i32_2 = arith.constant 4 : i32
    %6 = arith.cmpi eq, %arg0, %c4_i32_2 : i32
    %7 = arith.extui %6 : i1 to i32
    %c0_i32_3 = arith.constant 0 : i32
    %8 = arith.cmpi ne, %7, %c0_i32_3 : i32
    scf.if %8 {
      %12 = tpu.iota {dimensions = array<i32: 1>} : vector<1x8x1xi32>
      %c5_i32 = arith.constant 5 : i32
      %13 = vector.broadcast %c5_i32 : i32 to vector<1x8x1xi32>
      %14 = arith.cmpi slt, %12, %13 : vector<1x8x1xi32>
      %c0 = arith.constant 0 : index
      %c0_6 = arith.constant 0 : index
      %c0_7 = arith.constant 0 : index
      %15 = vector.load %arg1[%c0, %c0_6, %c0_7] : memref<4x8x32xf32, #tpu.memory_space<vmem>>, vector<4x8x32xf32>
      %cst = arith.constant 0.000000e+00 : f32
      %16 = vector.shape_cast %14 : vector<1x8x1xi1> to vector<1x8x1xi1>
      %17 = vector.broadcast %16 : vector<1x8x1xi1> to vector<4x8x32xi1>
      %18 = vector.broadcast %cst : f32 to vector<4x8x32xf32>
      %19 = arith.select %17, %15, %18 : vector<4x8x32xi1>, vector<4x8x32xf32>
      %c0_8 = arith.constant 0 : index
      %c0_9 = arith.constant 0 : index
      %20 = vector.load %arg14[%c0_8, %c0_9] : memref<4x32xf32, #tpu.memory_space<vmem>>, vector<4x32xf32>
      %cst_10 = arith.constant dense<0.000000e+00> : vector<4x32xf32>
      %21 = vector.multi_reduction <add>, %19, %cst_10 [1] : vector<4x8x32xf32> to vector<4x32xf32>
      %22 = arith.addf %20, %21 : vector<4x32xf32>
      %c0_11 = arith.constant 0 : index
      %c0_12 = arith.constant 0 : index
      %23 = vector.load %arg14[%c0_11, %c0_12] : memref<4x32xf32, #tpu.memory_space<vmem>>, vector<4x32xf32>
      tpu.vector_store %arg14[%c0_11, %c0_12], %22 {strides = array<i32>} : memref<4x32xf32, #tpu.memory_space<vmem>>, vector<4x32xf32>,
    } else {
    }
    %c4_i32_4 = arith.constant 4 : i32
    %9 = arith.cmpi eq, %arg0, %c4_i32_4 : i32
    %10 = arith.extui %9 : i1 to i32
    %c0_i32_5 = arith.constant 0 : i32
    %11 = arith.cmpi ne, %10, %c0_i32_5 : i32
    scf.if %11 {
      %c0 = arith.constant 0 : index
      %c0_6 = arith.constant 0 : index
      %12 = vector.load %arg14[%c0, %c0_6] : memref<4x32xf32, #tpu.memory_space<vmem>>, vector<4x32xf32>
      %c0_7 = arith.constant 0 : index
      %c0_8 = arith.constant 0 : index
      %13 = vector.load %arg3[%c0_7, %c0_8] : memref<32x256xf32, #tpu.memory_space<vmem>>, vector<32x256xf32>
      %cst = arith.constant dense<0.000000e+00> : vector<4x256xf32>
      %14 = tpu.matmul %12, %13, %cst {dimension_numbers = #tpu.dot_dimension_numbers<[1], [0], [0], [1], [0, 0, 1, 1], [], []>} : vector<4x32xf32>, vector<32x256xf32>, vector<4x256xf32> -> vector<4x256xf32>
      %c0_9 = arith.constant 0 : index
      %c0_10 = arith.constant 0 : index
      %15 = vector.load %arg4[%c0_9, %c0_10] : memref<1x256xf32, #tpu.memory_space<vmem>>, vector<1x256xf32>
      %16 = vector.broadcast %15 : vector<1x256xf32> to vector<4x256xf32>
      %17 = arith.addf %14, %16 : vector<4x256xf32>
      %c0_11 = arith.constant 0 : index
      %c0_12 = arith.constant 0 : index
      %18 = vector.load %arg5[%c0_11, %c0_12] : memref<1x256xf32, #tpu.memory_space<vmem>>, vector<1x256xf32>
      %c0_13 = arith.constant 0 : index
      %c0_14 = arith.constant 0 : index
      %19 = vector.load %arg6[%c0_13, %c0_14] : memref<1x256xf32, #tpu.memory_space<vmem>>, vector<1x256xf32>
      %cst_15 = arith.constant dense<0.000000e+00> : vector<256xf32>
      %20 = vector.multi_reduction <add>, %17, %cst_15 [0] : vector<4x256xf32> to vector<256xf32>
      %21 = vector.shape_cast %20 : vector<256xf32> to vector<1x256xf32>
      %cst_16 = arith.constant 4.000000e+00 : f32
      %22 = vector.broadcast %cst_16 : f32 to vector<1x256xf32>
      %23 = arith.divf %21, %22 : vector<1x256xf32>
      %24 = vector.broadcast %23 : vector<1x256xf32> to vector<4x256xf32>
      %25 = arith.subf %17, %24 : vector<4x256xf32>
      %26 = arith.mulf %25, %25 : vector<4x256xf32>
      %cst_17 = arith.constant dense<0.000000e+00> : vector<256xf32>
      %27 = vector.multi_reduction <add>, %26, %cst_17 [0] : vector<4x256xf32> to vector<256xf32>
      %28 = vector.shape_cast %27 : vector<256xf32> to vector<1x256xf32>
      %cst_18 = arith.constant 4.000000e+00 : f32
      %29 = vector.broadcast %cst_18 : f32 to vector<1x256xf32>
      %30 = arith.divf %28, %29 : vector<1x256xf32>
      %31 = vector.broadcast %18 : vector<1x256xf32> to vector<4x256xf32>
      %32 = arith.mulf %31, %25 : vector<4x256xf32>
      %cst_19 = arith.constant 9.99999974E-6 : f32
      %33 = vector.broadcast %cst_19 : f32 to vector<1x256xf32>
      %34 = arith.addf %30, %33 : vector<1x256xf32>
      %35 = math.rsqrt %34 : vector<1x256xf32>
      %36 = vector.broadcast %35 : vector<1x256xf32> to vector<4x256xf32>
      %37 = arith.mulf %32, %36 : vector<4x256xf32>
      %38 = vector.broadcast %19 : vector<1x256xf32> to vector<4x256xf32>
      %39 = arith.addf %37, %38 : vector<4x256xf32>
      %cst_20 = arith.constant 0.000000e+00 : f32
      %40 = vector.broadcast %cst_20 : f32 to vector<4x256xf32>
      %41 = arith.maximumf %39, %40 : vector<4x256xf32>
      %c0_21 = arith.constant 0 : index
      %c0_22 = arith.constant 0 : index
      %42 = vector.load %arg7[%c0_21, %c0_22] : memref<256x256xf32, #tpu.memory_space<vmem>>, vector<256x256xf32>
      %cst_23 = arith.constant dense<0.000000e+00> : vector<4x256xf32>
      %43 = tpu.matmul %41, %42, %cst_23 {dimension_numbers = #tpu.dot_dimension_numbers<[1], [0], [0], [1], [0, 0, 1, 1], [], []>} : vector<4x256xf32>, vector<256x256xf32>, vector<4x256xf32> -> vector<4x256xf32>
      %c0_24 = arith.constant 0 : index
      %c0_25 = arith.constant 0 : index
      %44 = vector.load %arg8[%c0_24, %c0_25] : memref<1x256xf32, #tpu.memory_space<vmem>>, vector<1x256xf32>
      %45 = vector.broadcast %44 : vector<1x256xf32> to vector<4x256xf32>
      %46 = arith.addf %43, %45 : vector<4x256xf32>
      %c0_26 = arith.constant 0 : index
      %c0_27 = arith.constant 0 : index
      %47 = vector.load %arg9[%c0_26, %c0_27] : memref<1x256xf32, #tpu.memory_space<vmem>>, vector<1x256xf32>
      %c0_28 = arith.constant 0 : index
      %c0_29 = arith.constant 0 : index
      %48 = vector.load %arg10[%c0_28, %c0_29] : memref<1x256xf32, #tpu.memory_space<vmem>>, vector<1x256xf32>
      %cst_30 = arith.constant dense<0.000000e+00> : vector<256xf32>
      %49 = vector.multi_reduction <add>, %46, %cst_30 [0] : vector<4x256xf32> to vector<256xf32>
      %50 = vector.shape_cast %49 : vector<256xf32> to vector<1x256xf32>
      %cst_31 = arith.constant 4.000000e+00 : f32
      %51 = vector.broadcast %cst_31 : f32 to vector<1x256xf32>
      %52 = arith.divf %50, %51 : vector<1x256xf32>
      %53 = vector.broadcast %52 : vector<1x256xf32> to vector<4x256xf32>
      %54 = arith.subf %46, %53 : vector<4x256xf32>
      %55 = arith.mulf %54, %54 : vector<4x256xf32>
      %cst_32 = arith.constant dense<0.000000e+00> : vector<256xf32>
      %56 = vector.multi_reduction <add>, %55, %cst_32 [0] : vector<4x256xf32> to vector<256xf32>
      %57 = vector.shape_cast %56 : vector<256xf32> to vector<1x256xf32>
      %cst_33 = arith.constant 4.000000e+00 : f32
      %58 = vector.broadcast %cst_33 : f32 to vector<1x256xf32>
      %59 = arith.divf %57, %58 : vector<1x256xf32>
      %60 = vector.broadcast %47 : vector<1x256xf32> to vector<4x256xf32>
      %61 = arith.mulf %60, %54 : vector<4x256xf32>
      %cst_34 = arith.constant 9.99999974E-6 : f32
      %62 = vector.broadcast %cst_34 : f32 to vector<1x256xf32>
      %63 = arith.addf %59, %62 : vector<1x256xf32>
      %64 = math.rsqrt %63 : vector<1x256xf32>
      %65 = vector.broadcast %64 : vector<1x256xf32> to vector<4x256xf32>
      %66 = arith.mulf %61, %65 : vector<4x256xf32>
      %67 = vector.broadcast %48 : vector<1x256xf32> to vector<4x256xf32>
      %68 = arith.addf %66, %67 : vector<4x256xf32>
      %cst_35 = arith.constant 0.000000e+00 : f32
      %69 = vector.broadcast %cst_35 : f32 to vector<4x256xf32>
      %70 = arith.maximumf %68, %69 : vector<4x256xf32>
      %c0_36 = arith.constant 0 : index
      %c0_37 = arith.constant 0 : index
      %71 = vector.load %arg11[%c0_36, %c0_37] : memref<256x8xf32, #tpu.memory_space<vmem>>, vector<256x8xf32>
      %cst_38 = arith.constant dense<0.000000e+00> : vector<4x8xf32>
      %72 = tpu.matmul %70, %71, %cst_38 {dimension_numbers = #tpu.dot_dimension_numbers<[1], [0], [0], [1], [0, 0, 1, 1], [], []>} : vector<4x256xf32>, vector<256x8xf32>, vector<4x8xf32> -> vector<4x8xf32>
      %c0_39 = arith.constant 0 : index
      %c0_40 = arith.constant 0 : index
      %73 = vector.load %arg12[%c0_39, %c0_40] : memref<1x8xf32, #tpu.memory_space<vmem>>, vector<1x8xf32>
      %74 = vector.broadcast %73 : vector<1x8xf32> to vector<4x8xf32>
      %75 = arith.addf %72, %74 : vector<4x8xf32>
      %c0_41 = arith.constant 0 : index
      %c0_42 = arith.constant 0 : index
      %76 = vector.load %arg2[%c0_41, %c0_42] : memref<4x8xf32, #tpu.memory_space<vmem>>, vector<4x8xf32>
      %77 = arith.subf %75, %76 : vector<4x8xf32>
      %78 = arith.mulf %77, %77 : vector<4x8xf32>
      %79 = vector.shape_cast %78 : vector<4x8xf32> to vector<1x4x8xf32>
      %cst_43 = arith.constant dense<0.000000e+00> : vector<1xf32>
      %80 = vector.multi_reduction <add>, %79, %cst_43 [1, 2] : vector<1x4x8xf32> to vector<1xf32>
      %81 = vector.shape_cast %80 : vector<1xf32> to vector<1x1x1xf32>
      %82 = vector.extract %81[0, 0, 0] : f32 from vector<1x1x1xf32>
      %cst_44 = arith.constant 3.200000e+01 : f32
      %83 = arith.divf %82, %cst_44 : f32
      %c0_45 = arith.constant 0 : index
      %c0_46 = arith.constant 0 : index
      %84 = memref.load %arg13[%c0_45, %c0_46] : memref<1x1xf32, #tpu.memory_space<smem>>
      memref.store %83, %arg13[%c0_45, %c0_46] : memref<1x1xf32, #tpu.memory_space<smem>>
    } else {
    }
    return
  }
  func.func @transform_0(%arg0: i32) -> (i32, i32, i32) {
    %c0_i32 = arith.constant 0 : i32
    %c0_i32_0 = arith.constant 0 : i32
    %c0_i32_1 = arith.constant 0 : i32
    return %c0_i32, %arg0, %c0_i32_0 : i32, i32, i32
  }
  func.func @transform_1(%arg0: i32) -> (i32, i32) {
    %c0_i32 = arith.constant 0 : i32
    %c0_i32_0 = arith.constant 0 : i32
    %c0_i32_1 = arith.constant 0 : i32
    return %c0_i32, %c0_i32_0 : i32, i32
  }
  func.func @transform_2(%arg0: i32) -> (i32, i32) {
    %c0_i32 = arith.constant 0 : i32
    %c0_i32_0 = arith.constant 0 : i32
    %c0_i32_1 = arith.constant 0 : i32
    return %c0_i32, %c0_i32_0 : i32, i32
  }
  func.func @transform_3(%arg0: i32) -> (i32, i32) {
    %c0_i32 = arith.constant 0 : i32
    %c0_i32_0 = arith.constant 0 : i32
    %c0_i32_1 = arith.constant 0 : i32
    return %c0_i32, %c0_i32_0 : i32, i32
  }
  func.func @transform_4(%arg0: i32) -> (i32, i32) {
    %c0_i32 = arith.constant 0 : i32
    %c0_i32_0 = arith.constant 0 : i32
    %c0_i32_1 = arith.constant 0 : i32
    return %c0_i32, %c0_i32_0 : i32, i32
  }
  func.func @transform_5(%arg0: i32) -> (i32, i32) {
    %c0_i32 = arith.constant 0 : i32
    %c0_i32_0 = arith.constant 0 : i32
    %c0_i32_1 = arith.constant 0 : i32
    return %c0_i32, %c0_i32_0 : i32, i32
  }
  func.func @transform_6(%arg0: i32) -> (i32, i32) {
    %c0_i32 = arith.constant 0 : i32
    %c0_i32_0 = arith.constant 0 : i32
    %c0_i32_1 = arith.constant 0 : i32
    return %c0_i32, %c0_i32_0 : i32, i32
  }
  func.func @transform_7(%arg0: i32) -> (i32, i32) {
    %c0_i32 = arith.constant 0 : i32
    %c0_i32_0 = arith.constant 0 : i32
    %c0_i32_1 = arith.constant 0 : i32
    return %c0_i32, %c0_i32_0 : i32, i32
  }
  func.func @transform_8(%arg0: i32) -> (i32, i32) {
    %c0_i32 = arith.constant 0 : i32
    %c0_i32_0 = arith.constant 0 : i32
    %c0_i32_1 = arith.constant 0 : i32
    return %c0_i32, %c0_i32_0 : i32, i32
  }
  func.func @transform_9(%arg0: i32) -> (i32, i32) {
    %c0_i32 = arith.constant 0 : i32
    %c0_i32_0 = arith.constant 0 : i32
    %c0_i32_1 = arith.constant 0 : i32
    return %c0_i32, %c0_i32_0 : i32, i32
  }
  func.func @transform_10(%arg0: i32) -> (i32, i32) {
    %c0_i32 = arith.constant 0 : i32
    %c0_i32_0 = arith.constant 0 : i32
    %c0_i32_1 = arith.constant 0 : i32
    return %c0_i32, %c0_i32_0 : i32, i32
  }
  func.func @transform_11(%arg0: i32) -> (i32, i32) {
    %c0_i32 = arith.constant 0 : i32
    %c0_i32_0 = arith.constant 0 : i32
    %c0_i32_1 = arith.constant 0 : i32
    return %c0_i32, %c0_i32_0 : i32, i32
  }
  func.func @transform_12(%arg0: i32) -> (i32, i32) {
    %c0_i32 = arith.constant 0 : i32
    %c0_i32_0 = arith.constant 0 : i32
    %c0_i32_1 = arith.constant 0 : i32
    return %c0_i32, %c0_i32_0 : i32, i32
  }
}

</mosaic_0001>

<llo_original>
// kernel: tpu_custom_call.1
$region0: #{tpu_custom_call.1}
  #allocation0 [shape = 'u32[]', space=smem, size = 0x4, offset = 0x4, fixed_abs, tag = 'smem constant byte address 0x4 - core index']
  #allocation1 [shape = 'u32[72,128]{1,0:T(1,128)}', space=vmem, size = 0x9000, scoped, tag = 'internal scratch']
  #allocation2 [shape = 'f32[4,32]{1,0:T(4,128)}', space=vmem, size = 0x800, scoped, tag = 'scratch operand']
  %s0 = inlined_call_operand.vmem [shape: f32[4,37,32], index: 0, kind: input, shape index: {}]
  %s1 = inlined_call_operand.vmem [shape: f32[4,8], index: 1, kind: input, shape index: {}]
  %s2 = inlined_call_operand.hbm [shape: f32[32,256], index: 2, kind: input, shape index: {}]
  %s3 = inlined_call_operand.vmem [shape: f32[1,256], index: 3, kind: input, shape index: {}]
  %s4 = inlined_call_operand.vmem [shape: f32[1,256], index: 4, kind: input, shape index: {}]
  %s5 = inlined_call_operand.vmem [shape: f32[1,256], index: 5, kind: input, shape index: {}]
  %s6 = inlined_call_operand.vmem [shape: f32[256,256], index: 6, kind: input, shape index: {}]
  %s7 = inlined_call_operand.vmem [shape: f32[1,256], index: 7, kind: input, shape index: {}]
  %s8 = inlined_call_operand.vmem [shape: f32[1,256], index: 8, kind: input, shape index: {}]
  %s9 = inlined_call_operand.vmem [shape: f32[1,256], index: 9, kind: input, shape index: {}]
  %s10 = inlined_call_operand.vmem [shape: f32[256,8], index: 10, kind: input, shape index: {}]
  %s11 = inlined_call_operand.vmem [shape: f32[1,8], index: 11, kind: input, shape index: {}]
  %s12 = inlined_call_operand.hbm [shape: f32[1,1], index: 12, kind: output, shape index: {}]
  %s13 = sld [smem:[#allocation0]]
  $region135: #{tpu_custom_call.1} parent=0
    _
  %s15 = ssub.s32 1, %s13
  %s16 = scalar_select 0, %s15, %s13
  $region1: #{tpu_custom_call.1} parent=0
    #allocation3 [shape = 'u8[32768]{0}', space=vmem, size = 0x8000, scoped, tag = 'input window, operand 0']
    #allocation4 [shape = 'u8[32768]{0}', space=vmem, size = 0x8000, scoped, tag = 'input window, operand 2, single buffered']
    #allocation5 [shape = 's32[2]{0}', space=sflag, size = 0x8, scoped, tag = 'scoped memory for tpu_custom_call.1']
    #allocation6 [shape = 's32[2]{0}', space=sflag, size = 0x8, scoped, tag = 'scoped memory for tpu_custom_call.1']
    #allocation7 [shape = 'u8[512]{0}', space=smem, size = 0x200, scoped, tag = 'output window, operand 0, single buffered']
    %17 = vsyncpa [#allocation5], 0
    %18 = vsyncpa [#allocation6], 0
    loop: start=0, step=1, limit=7
    $region2: #{tpu_custom_call.1} parent=1 // loop_pre_header
      _
    $region3: #{tpu_custom_call.1} parent=1 // loop_header
      %s20 = sphi 0, %s24
      %p21 = scmp.ge.s32.totalorder %s20, 7
      %s30 = sphi 0, %s32
      %s33 = sphi 0, %s30
      %s34 = sphi 0, %s33
      %s50 = sphi 0, %s34
      %s54 = sphi 0, %s54
      %s56 = sphi 0, %s54
      %s57 = sphi 0, %s56
      %s71 = sphi 0, %s57
      %s75 = sphi 0, %s75
      %s77 = sphi 0, %s75
      %s78 = sphi 0, %s77
      %s92 = sphi 0, %s78
      %s96 = sphi 0, %s96
      %s98 = sphi 0, %s96
      %s99 = sphi 0, %s98
      %s113 = sphi 0, %s99
      %s117 = sphi 0, %s117
      %s119 = sphi 0, %s117
      %s120 = sphi 0, %s119
      %s134 = sphi 0, %s120
      %s138 = sphi 0, %s138
      %s140 = sphi 0, %s138
      %s141 = sphi 0, %s140
      %s155 = sphi 0, %s141
      %s159 = sphi 0, %s159
      %s161 = sphi 0, %s159
      %s162 = sphi 0, %s161
      %s176 = sphi 0, %s162
      %s180 = sphi 0, %s180
      %s182 = sphi 0, %s180
      %s183 = sphi 0, %s182
      %s197 = sphi 0, %s183
      %s201 = sphi 0, %s201
      %s203 = sphi 0, %s201
      %s204 = sphi 0, %s203
      %s218 = sphi 0, %s204
      %s222 = sphi 0, %s222
      %s224 = sphi 0, %s222
      %s225 = sphi 0, %s224
      %s239 = sphi 0, %s225
      %s243 = sphi 0, %s243
      %s245 = sphi 0, %s243
      %s246 = sphi 0, %s245
      %s260 = sphi 0, %s246
      %s264 = sphi 0, %s264
      %s266 = sphi 0, %s264
      %s267 = sphi 0, %s266
      %s281 = sphi 0, %s267
      %s285 = sphi 0, %s285
      %s287 = sphi 0, %s285
      %s288 = sphi 0, %s287
      %s302 = sphi 0, %s288
    $region4: #{tpu_custom_call.1} parent=1 // loop_header_branch
      %23 = sbr.rel (%p21) target = $region8
    $region5: #{tpu_custom_call.1} parent=1 // loop_body
      %s25 = ssub.s32 %s20, 1
      %s26 = ssub.s32 %s20, 2
      %s27 = sadd.s32 %s20, 1
      %s28 = ssub.s32 %s20, %s27
      %p29 = scmp.eq.s32.totalorder %s28, 0
      %s31 = sadd.s32 %s30, 1
      %s32 = scalar_select %p29, %s30, %s31
      %p35 = pneg %p29
      %p36 = scmp.eq.s32.totalorder %s20, 4
      %p37 = por %p35, %p36
      %p38 = scmp.ne.s32.totalorder %s30, %s33
      %p39 = scmp.eq.s32.totalorder %s20, 0
      %p40 = por %p38, %p39
      %p41 = scmp.ne.s32.totalorder %s30, %s33
      %p42 = scmp.eq.s32.totalorder %s25, 4
      %p43 = por %p41, %p42
      %p44 = scmp.ne.s32.totalorder %s33, %s34
      %p45 = scmp.eq.s32.totalorder %s25, 0
      %p46 = por %p44, %p45
      %p47 = scmp.ne.s32.totalorder %s33, %s34
      %p48 = scmp.eq.s32.totalorder %s26, 4
      %p49 = por %p47, %p48
      %p51 = scmp.ne.s32.totalorder %s34, %s50
      %p52 = scmp.eq.s32.totalorder %s26, 0
      %p53 = por %p51, %p52
      %s55 = sadd.s32 %s54, 1
      %p58 = scmp.eq.s32.totalorder %s20, 4
      %p59 = scmp.ne.s32.totalorder %s54, %s56
      %p60 = scmp.eq.s32.totalorder %s20, 0
      %p61 = por %p59, %p60
      %p62 = scmp.ne.s32.totalorder %s54, %s56
      %p63 = scmp.eq.s32.totalorder %s25, 4
      %p64 = por %p62, %p63
      %p65 = scmp.ne.s32.totalorder %s56, %s57
      %p66 = scmp.eq.s32.totalorder %s25, 0
      %p67 = por %p65, %p66
      %p68 = scmp.ne.s32.totalorder %s56, %s57
      %p69 = scmp.eq.s32.totalorder %s26, 4
      %p70 = por %p68, %p69
      %p72 = scmp.ne.s32.totalorder %s57, %s71
      %p73 = scmp.eq.s32.totalorder %s26, 0
      %p74 = por %p72, %p73
      %s76 = sadd.s32 %s75, 1
      %p79 = scmp.eq.s32.totalorder %s20, 4
      %p80 = scmp.ne.s32.totalorder %s75, %s77
      %p81 = scmp.eq.s32.totalorder %s20, 0
      %p82 = por %p80, %p81
      %p83 = scmp.ne.s32.totalorder %s75, %s77
      %p84 = scmp.eq.s32.totalorder %s25, 4
      %p85 = por %p83, %p84
      %p86 = scmp.ne.s32.totalorder %s77, %s78
      %p87 = scmp.eq.s32.totalorder %s25, 0
      %p88 = por %p86, %p87
      %p89 = scmp.ne.s32.totalorder %s77, %s78
      %p90 = scmp.eq.s32.totalorder %s26, 4
      %p91 = por %p89, %p90
      %p93 = scmp.ne.s32.totalorder %s78, %s92
      %p94 = scmp.eq.s32.totalorder %s26, 0
      %p95 = por %p93, %p94
      %s97 = sadd.s32 %s96, 1
      %p100 = scmp.eq.s32.totalorder %s20, 4
      %p101 = scmp.ne.s32.totalorder %s96, %s98
      %p102 = scmp.eq.s32.totalorder %s20, 0
      %p103 = por %p101, %p102
      %p104 = scmp.ne.s32.totalorder %s96, %s98
      %p105 = scmp.eq.s32.totalorder %s25, 4
      %p106 = por %p104, %p105
      %p107 = scmp.ne.s32.totalorder %s98, %s99
      %p108 = scmp.eq.s32.totalorder %s25, 0
      %p109 = por %p107, %p108
      %p110 = scmp.ne.s32.totalorder %s98, %s99
      %p111 = scmp.eq.s32.totalorder %s26, 4
      %p112 = por %p110, %p111
      %p114 = scmp.ne.s32.totalorder %s99, %s113
      %p115 = scmp.eq.s32.totalorder %s26, 0
      %p116 = por %p114, %p115
      %s118 = sadd.s32 %s117, 1
      %p121 = scmp.eq.s32.totalorder %s20, 4
      %p122 = scmp.ne.s32.totalorder %s117, %s119
      %p123 = scmp.eq.s32.totalorder %s20, 0
      %p124 = por %p122, %p123
      %p125 = scmp.ne.s32.totalorder %s117, %s119
      %p126 = scmp.eq.s32.totalorder %s25, 4
      %p127 = por %p125, %p126
      %p128 = scmp.ne.s32.totalorder %s119, %s120
      %p129 = scmp.eq.s32.totalorder %s25, 0
      %p130 = por %p128, %p129
      %p131 = scmp.ne.s32.totalorder %s119, %s120
      %p132 = scmp.eq.s32.totalorder %s26, 4
      %p133 = por %p131, %p132
      %p135 = scmp.ne.s32.totalorder %s120, %s134
      %p136 = scmp.eq.s32.totalorder %s26, 0
      %p137 = por %p135, %p136
      %s139 = sadd.s32 %s138, 1
      %p142 = scmp.eq.s32.totalorder %s20, 4
      %p143 = scmp.ne.s32.totalorder %s138, %s140
      %p144 = scmp.eq.s32.totalorder %s20, 0
      %p145 = por %p143, %p144
      %p146 = scmp.ne.s32.totalorder %s138, %s140
      %p147 = scmp.eq.s32.totalorder %s25, 4
      %p148 = por %p146, %p147
      %p149 = scmp.ne.s32.totalorder %s140, %s141
      %p150 = scmp.eq.s32.totalorder %s25, 0
      %p151 = por %p149, %p150
      %p152 = scmp.ne.s32.totalorder %s140, %s141
      %p153 = scmp.eq.s32.totalorder %s26, 4
      %p154 = por %p152, %p153
      %p156 = scmp.ne.s32.totalorder %s141, %s155
      %p157 = scmp.eq.s32.totalorder %s26, 0
      %p158 = por %p156, %p157
      %s160 = sadd.s32 %s159, 1
      %p163 = scmp.eq.s32.totalorder %s20, 4
      %p164 = scmp.ne.s32.totalorder %s159, %s161
      %p165 = scmp.eq.s32.totalorder %s20, 0
      %p166 = por %p164, %p165
      %p167 = scmp.ne.s32.totalorder %s159, %s161
      %p168 = scmp.eq.s32.totalorder %s25, 4
      %p169 = por %p167, %p168
      %p170 = scmp.ne.s32.totalorder %s161, %s162
      %p171 = scmp.eq.s32.totalorder %s25, 0
      %p172 = por %p170, %p171
      %p173 = scmp.ne.s32.totalorder %s161, %s162
      %p174 = scmp.eq.s32.totalorder %s26, 4
      %p175 = por %p173, %p174
      %p177 = scmp.ne.s32.totalorder %s162, %s176
      %p178 = scmp.eq.s32.totalorder %s26, 0
      %p179 = por %p177, %p178
      %s181 = sadd.s32 %s180, 1
      %p184 = scmp.eq.s32.totalorder %s20, 4
      %p185 = scmp.ne.s32.totalorder %s180, %s182
      %p186 = scmp.eq.s32.totalorder %s20, 0
      %p187 = por %p185, %p186
      %p188 = scmp.ne.s32.totalorder %s180, %s182
      %p189 = scmp.eq.s32.totalorder %s25, 4
      %p190 = por %p188, %p189
      %p191 = scmp.ne.s32.totalorder %s182, %s183
      %p192 = scmp.eq.s32.totalorder %s25, 0
      %p193 = por %p191, %p192
      %p194 = scmp.ne.s32.totalorder %s182, %s183
      %p195 = scmp.eq.s32.totalorder %s26, 4
      %p196 = por %p194, %p195
      %p198 = scmp.ne.s32.totalorder %s183, %s197
      %p199 = scmp.eq.s32.totalorder %s26, 0
      %p200 = por %p198, %p199
      %s202 = sadd.s32 %s201, 1
      %p205 = scmp.eq.s32.totalorder %s20, 4
      %p206 = scmp.ne.s32.totalorder %s201, %s203
      %p207 = scmp.eq.s32.totalorder %s20, 0
      %p208 = por %p206, %p207
      %p209 = scmp.ne.s32.totalorder %s201, %s203
      %p210 = scmp.eq.s32.totalorder %s25, 4
      %p211 = por %p209, %p210
      %p212 = scmp.ne.s32.totalorder %s203, %s204
      %p213 = scmp.eq.s32.totalorder %s25, 0
      %p214 = por %p212, %p213
      %p215 = scmp.ne.s32.totalorder %s203, %s204
      %p216 = scmp.eq.s32.totalorder %s26, 4
      %p217 = por %p215, %p216
      %p219 = scmp.ne.s32.totalorder %s204, %s218
      %p220 = scmp.eq.s32.totalorder %s26, 0
      %p221 = por %p219, %p220
      %s223 = sadd.s32 %s222, 1
      %p226 = scmp.eq.s32.totalorder %s20, 4
      %p227 = scmp.ne.s32.totalorder %s222, %s224
      %p228 = scmp.eq.s32.totalorder %s20, 0
      %p229 = por %p227, %p228
      %p230 = scmp.ne.s32.totalorder %s222, %s224
      %p231 = scmp.eq.s32.totalorder %s25, 4
      %p232 = por %p230, %p231
      %p233 = scmp.ne.s32.totalorder %s224, %s225
      %p234 = scmp.eq.s32.totalorder %s25, 0
      %p235 = por %p233, %p234
      %p236 = scmp.ne.s32.totalorder %s224, %s225
      %p237 = scmp.eq.s32.totalorder %s26, 4
      %p238 = por %p236, %p237
      %p240 = scmp.ne.s32.totalorder %s225, %s239
      %p241 = scmp.eq.s32.totalorder %s26, 0
      %p242 = por %p240, %p241
      %s244 = sadd.s32 %s243, 1
      %p247 = scmp.eq.s32.totalorder %s20, 4
      %p248 = scmp.ne.s32.totalorder %s243, %s245
      %p249 = scmp.eq.s32.totalorder %s20, 0
      %p250 = por %p248, %p249
      %p251 = scmp.ne.s32.totalorder %s243, %s245
      %p252 = scmp.eq.s32.totalorder %s25, 4
      %p253 = por %p251, %p252
      %p254 = scmp.ne.s32.totalorder %s245, %s246
      %p255 = scmp.eq.s32.totalorder %s25, 0
      %p256 = por %p254, %p255
      %p257 = scmp.ne.s32.totalorder %s245, %s246
      %p258 = scmp.eq.s32.totalorder %s26, 4
      %p259 = por %p257, %p258
      %p261 = scmp.ne.s32.totalorder %s246, %s260
      %p262 = scmp.eq.s32.totalorder %s26, 0
      %p263 = por %p261, %p262
      %s265 = sadd.s32 %s264, 1
      %p268 = scmp.eq.s32.totalorder %s20, 4
      %p269 = scmp.ne.s32.totalorder %s264, %s266
      %p270 = scmp.eq.s32.totalorder %s20, 0
      %p271 = por %p269, %p270
      %p272 = scmp.ne.s32.totalorder %s264, %s266
      %p273 = scmp.eq.s32.totalorder %s25, 4
      %p274 = por %p272, %p273
      %p275 = scmp.ne.s32.totalorder %s266, %s267
      %p276 = scmp.eq.s32.totalorder %s25, 0
      %p277 = por %p275, %p276
      %p278 = scmp.ne.s32.totalorder %s266, %s267
      %p279 = scmp.eq.s32.totalorder %s26, 4
      %p280 = por %p278, %p279
      %p282 = scmp.ne.s32.totalorder %s267, %s281
      %p283 = scmp.eq.s32.totalorder %s26, 0
      %p284 = por %p282, %p283
      %s286 = sadd.s32 %s285, 1
      %p289 = scmp.eq.s32.totalorder %s20, 4
      %p290 = scmp.ne.s32.totalorder %s285, %s287
      %p291 = scmp.eq.s32.totalorder %s20, 0
      %p292 = por %p290, %p291
      %p293 = scmp.ne.s32.totalorder %s285, %s287
      %p294 = scmp.eq.s32.totalorder %s25, 4
      %p295 = por %p293, %p294
      %p296 = scmp.ne.s32.totalorder %s287, %s288
      %p297 = scmp.eq.s32.totalorder %s25, 0
      %p298 = por %p296, %p297
      %p299 = scmp.ne.s32.totalorder %s287, %s288
      %p300 = scmp.eq.s32.totalorder %s26, 4
      %p301 = por %p299, %p300
      %p303 = scmp.ne.s32.totalorder %s288, %s302
      %p304 = scmp.eq.s32.totalorder %s26, 0
      %p305 = por %p303, %p304
      %p306 = scmp.le.s32.totalorder 1, %s20
      %p307 = scmp.lt.s32.totalorder %s20, 6
      %p308 = pnand %p306, %p307
      %p309 = pneg %p308
      // Predicated region
      $region9: #{tpu_custom_call.1} parent=5 // pred_check
        _
      $region10: #{tpu_custom_call.1} parent=5 // pred_check_branch
        %311 = sbr.rel (%p308) target = $region12
      $region11: #{tpu_custom_call.1} parent=5 // pred_region
        %s312 = ssub.s32 %s20, 1
        // Predicated region
        $region13: #{tpu_custom_call.1} parent=11 // pred_check
          %p313 = pneg %p67
        $region14: #{tpu_custom_call.1} parent=11 // pred_check_branch
          %315 = sbr.rel (%p313) target = $region16
        $region15: #{tpu_custom_call.1} parent=11 // pred_region
          _
        $region16: #{tpu_custom_call.1} parent=11 // pred_fallthru
          _
        // Predicated region
        $region17: #{tpu_custom_call.1} parent=11 // pred_check
          %p316 = pneg %p88
        $region18: #{tpu_custom_call.1} parent=11 // pred_check_branch
          %318 = sbr.rel (%p316) target = $region20
        $region19: #{tpu_custom_call.1} parent=11 // pred_region
          %320 = vsyncadd [#allocation5], 0
          %s321 = sshll.u32 %s2, 4
          %s322 = int_to_ptr.hbm [resolvable:$true] %s321
          %s323 = sshll.u32 [#allocation4], 4
          %s324 = int_to_ptr.vmem [resolvable:$true] %s323
          %329 = dma.hbm_to_vmem [thread:$0]  %s322, 1024, %s324, [#allocation5], 256, 256, 16
        $region20: #{tpu_custom_call.1} parent=11 // pred_fallthru
          _
        // Predicated region
        $region21: #{tpu_custom_call.1} parent=11 // pred_check
          %p330 = pneg %p109
        $region22: #{tpu_custom_call.1} parent=11 // pred_check_branch
          %332 = sbr.rel (%p330) target = $region24
        $region23: #{tpu_custom_call.1} parent=11 // pred_region
          _
        $region24: #{tpu_custom_call.1} parent=11 // pred_fallthru
          _
        // Predicated region
        $region25: #{tpu_custom_call.1} parent=11 // pred_check
          %p333 = pneg %p130
        $region26: #{tpu_custom_call.1} parent=11 // pred_check_branch
          %335 = sbr.rel (%p333) target = $region28
        $region27: #{tpu_custom_call.1} parent=11 // pred_region
          _
        $region28: #{tpu_custom_call.1} parent=11 // pred_fallthru
          _
        // Predicated region
        $region29: #{tpu_custom_call.1} parent=11 // pred_check
          %p336 = pneg %p151
        $region30: #{tpu_custom_call.1} parent=11 // pred_check_branch
          %338 = sbr.rel (%p336) target = $region32
        $region31: #{tpu_custom_call.1} parent=11 // pred_region
          _
        $region32: #{tpu_custom_call.1} parent=11 // pred_fallthru
          _
        // Predicated region
        $region33: #{tpu_custom_call.1} parent=11 // pred_check
          %p339 = pneg %p172
        $region34: #{tpu_custom_call.1} parent=11 // pred_check_branch
          %341 = sbr.rel (%p339) target = $region36
        $region35: #{tpu_custom_call.1} parent=11 // pred_region
          _
        $region36: #{tpu_custom_call.1} parent=11 // pred_fallthru
          _
        // Predicated region
        $region37: #{tpu_custom_call.1} parent=11 // pred_check
          %p342 = pneg %p193
        $region38: #{tpu_custom_call.1} parent=11 // pred_check_branch
          %344 = sbr.rel (%p342) target = $region40
        $region39: #{tpu_custom_call.1} parent=11 // pred_region
          _
        $region40: #{tpu_custom_call.1} parent=11 // pred_fallthru
          _
        // Predicated region
        $region41: #{tpu_custom_call.1} parent=11 // pred_check
          %p345 = pneg %p214
        $region42: #{tpu_custom_call.1} parent=11 // pred_check_branch
          %347 = sbr.rel (%p345) target = $region44
        $region43: #{tpu_custom_call.1} parent=11 // pred_region
          _
        $region44: #{tpu_custom_call.1} parent=11 // pred_fallthru
          _
        // Predicated region
        $region45: #{tpu_custom_call.1} parent=11 // pred_check
          %p348 = pneg %p235
        $region46: #{tpu_custom_call.1} parent=11 // pred_check_branch
          %350 = sbr.rel (%p348) target = $region48
        $region47: #{tpu_custom_call.1} parent=11 // pred_region
          _
        $region48: #{tpu_custom_call.1} parent=11 // pred_fallthru
          _
        // Predicated region
        $region49: #{tpu_custom_call.1} parent=11 // pred_check
          %p351 = pneg %p256
        $region50: #{tpu_custom_call.1} parent=11 // pred_check_branch
          %353 = sbr.rel (%p351) target = $region52
        $region51: #{tpu_custom_call.1} parent=11 // pred_region
          _
        $region52: #{tpu_custom_call.1} parent=11 // pred_fallthru
          _
        // Predicated region
        $region53: #{tpu_custom_call.1} parent=11 // pred_check
          %p354 = pneg %p277
        $region54: #{tpu_custom_call.1} parent=11 // pred_check_branch
          %356 = sbr.rel (%p354) target = $region56
        $region55: #{tpu_custom_call.1} parent=11 // pred_region
          _
        $region56: #{tpu_custom_call.1} parent=11 // pred_fallthru
          _
      $region12: #{tpu_custom_call.1} parent=5 // pred_fallthru
        _
      %p357 = scmp.lt.s32.totalorder %s20, 5
      // Predicated region
      $region57: #{tpu_custom_call.1} parent=5 // pred_check
        %p358 = pneg %p357
      $region58: #{tpu_custom_call.1} parent=5 // pred_check_branch
        %360 = sbr.rel (%p358) target = $region60
      $region59: #{tpu_custom_call.1} parent=5 // pred_region
        // Predicated region
        $region61: #{tpu_custom_call.1} parent=59 // pred_check
          %p361 = pneg %p40
        $region62: #{tpu_custom_call.1} parent=59 // pred_check_branch
          %363 = sbr.rel (%p361) target = $region64
        $region63: #{tpu_custom_call.1} parent=59 // pred_region
          %s364 = sand.u32 %s30, 1
          %s365 = sand.u32 %s30, 1
          %s366 = smul.addr %s365, 32
          %s367 = scalar_lea.vmem [#allocation3], %s366
          %s368 = smul.addr %s20, 8
          %s369 = scalar_lea.vmem %s0, %s368
          // Predicated region
          $region65: #{tpu_custom_call.1} parent=63 // pred_check
            _
          $region66: #{tpu_custom_call.1} parent=63 // pred_check_branch
            %371 = sbr.rel (0) target = $region68
          $region67: #{tpu_custom_call.1} parent=63 // pred_region
            // Predicated region
            $region69: #{tpu_custom_call.1} parent=67 // pred_check
              _
            $region70: #{tpu_custom_call.1} parent=67 // pred_check_branch
              %373 = sbr.rel (0) target = $region72
            $region71: #{tpu_custom_call.1} parent=67 // pred_region
              // Predicated region
              $region84: #{tpu_custom_call.1} parent=71 // pred_check
                _
              $region85: #{tpu_custom_call.1} parent=71 // pred_check_branch
                %395 = sbr.rel (0) target = $region87
              $region86: #{tpu_custom_call.1} parent=71 // pred_region
                loop: start=0, step=1, limit=1
                $region88: #{tpu_custom_call.1} parent=86 // loop_pre_header
                  _
                $region89: #{tpu_custom_call.1} parent=86 // loop_header
                  %s397 = sphi 0, %s401
                  %p398 = scmp.ge.s32.totalorder %s397, 1
                  %s402 = sphi %s369, %s369
                  %s403 = sphi %s367, %s367
                $region90: #{tpu_custom_call.1} parent=86 // loop_header_branch
                  %400 = sbr.rel (%p398) target = $region94
                $region91: #{tpu_custom_call.1} parent=86 // loop_body
                  %v404 = vld [vmem:[%s402] sm:$0xff]
                  %405 = vst [vmem:[%s403] sm:$0xff] %v404
                  %v406 = vld [vmem:[%s402 + $0x28] sm:$0xff]
                  %407 = vst [vmem:[%s403 + $0x8] sm:$0xff] %v406
                  %v408 = vld [vmem:[%s402 + $0x50] sm:$0xff]
                  %409 = vst [vmem:[%s403 + $0x10] sm:$0xff] %v408
                  %v410 = vld [vmem:[%s402 + $0x78] sm:$0xff]
                  %411 = vst [vmem:[%s403 + $0x18] sm:$0xff] %v410
                $region92: #{tpu_custom_call.1} parent=86 // loop_footer
                  %s401 = sadd.s32 1, %s397
                $region93: #{tpu_custom_call.1} parent=86 // loop_footer_branch
                  %396 = sbr.rel target = $region89
                $region94: #{tpu_custom_call.1} parent=86 // loop_exit
                  _
              $region87: #{tpu_custom_call.1} parent=71 // pred_fallthru
                _
              // Predicated region
              $region95: #{tpu_custom_call.1} parent=71 // pred_check
                _
              $region96: #{tpu_custom_call.1} parent=71 // pred_check_branch
                %413 = sbr.rel target = $region98
              $region97: #{tpu_custom_call.1} parent=71 // pred_region
                _
              $region98: #{tpu_custom_call.1} parent=71 // pred_fallthru
                _
            $region72: #{tpu_custom_call.1} parent=67 // pred_fallthru
              _
            // Predicated region
            $region73: #{tpu_custom_call.1} parent=67 // pred_check
              _
            $region74: #{tpu_custom_call.1} parent=67 // pred_check_branch
              %375 = sbr.rel target = $region76
            $region75: #{tpu_custom_call.1} parent=67 // pred_region
              %s377 = ssub.s32 256, 1
              loop: start=0, step=1, limit=1
              $region77: #{tpu_custom_call.1} parent=75 // loop_pre_header
                _
              $region78: #{tpu_custom_call.1} parent=75 // loop_header
                %s379 = sphi 0, %s383
                %p380 = scmp.ge.s32.totalorder %s379, 1
                %s384 = sphi %s369, %s369
                %s385 = sphi %s367, %s367
              $region79: #{tpu_custom_call.1} parent=75 // loop_header_branch
                %382 = sbr.rel (%p380) target = $region83
              $region80: #{tpu_custom_call.1} parent=75 // loop_body
                %v386 = vld [vmem:[%s384] sm:%s377]
                %387 = vst [vmem:[%s385] sm:%s377] %v386
                %v388 = vld [vmem:[%s384 + $0x28] sm:%s377]
                %389 = vst [vmem:[%s385 + $0x8] sm:%s377] %v388
                %v390 = vld [vmem:[%s384 + $0x50] sm:%s377]
                %391 = vst [vmem:[%s385 + $0x10] sm:%s377] %v390
                %v392 = vld [vmem:[%s384 + $0x78] sm:%s377]
                %393 = vst [vmem:[%s385 + $0x18] sm:%s377] %v392
              $region81: #{tpu_custom_call.1} parent=75 // loop_footer
                %s383 = sadd.s32 1, %s379
              $region82: #{tpu_custom_call.1} parent=75 // loop_footer_branch
                %378 = sbr.rel target = $region78
              $region83: #{tpu_custom_call.1} parent=75 // loop_exit
                _
            $region76: #{tpu_custom_call.1} parent=67 // pred_fallthru
              _
          $region68: #{tpu_custom_call.1} parent=63 // pred_fallthru
            _
          %414 = vnop
        $region64: #{tpu_custom_call.1} parent=59 // pred_fallthru
          _
      $region60: #{tpu_custom_call.1} parent=5 // pred_fallthru
        _
      %p415 = scmp.le.s32.totalorder 1, %s20
      %p416 = scmp.lt.s32.totalorder %s20, 6
      %p417 = pnand %p415, %p416
      %p418 = pneg %p417
      // Predicated region
      $region99: #{tpu_custom_call.1} parent=5 // pred_check
        _
      $region100: #{tpu_custom_call.1} parent=5 // pred_check_branch
        %420 = sbr.rel (%p417) target = $region102
      $region101: #{tpu_custom_call.1} parent=5 // pred_region
        %s421 = ssub.s32 %s20, 1
        %s422 = sand.u32 %s33, 1
        %s423 = sand.u32 %s33, 1
        %s424 = smul.addr %s423, 32
        %s425 = scalar_lea.vmem [#allocation3], %s424
        // Predicated region
        $region103: #{tpu_custom_call.1} parent=101 // pred_check
          %p426 = pneg %p46
        $region104: #{tpu_custom_call.1} parent=101 // pred_check_branch
          %428 = sbr.rel (%p426) target = $region106
        $region105: #{tpu_custom_call.1} parent=101 // pred_region
          _
        $region106: #{tpu_custom_call.1} parent=101 // pred_fallthru
          _
        // Predicated region
        $region107: #{tpu_custom_call.1} parent=101 // pred_check
          %p429 = pneg %p88
        $region108: #{tpu_custom_call.1} parent=101 // pred_check_branch
          %431 = sbr.rel (%p429) target = $region110
        $region109: #{tpu_custom_call.1} parent=101 // pred_region
          %433 = dma.done [#allocation5], 1024
        $region110: #{tpu_custom_call.1} parent=101 // pred_fallthru
          _
        %s434 = sand.u32 %s33, 1
        %s435 = sand.u32 %s33, 1
        %s436 = smul.addr %s435, 32
        %s437 = scalar_lea.vmem [#allocation3], %s436
        %p438 = pneg %p46
        %p439 = pneg %p43
        %p440 = pneg %p67
        %p441 = pneg %p64
        %p442 = pneg %p88
        %p443 = pneg %p85
        %p444 = pneg %p109
        %p445 = pneg %p106
        %p446 = pneg %p130
        %p447 = pneg %p127
        %p448 = pneg %p151
        %p449 = pneg %p148
        %p450 = pneg %p172
        %p451 = pneg %p169
        %p452 = pneg %p193
        %p453 = pneg %p190
        %p454 = pneg %p214
        %p455 = pneg %p211
        %p456 = pneg %p235
        %p457 = pneg %p232
        %p458 = pneg %p256
        %p459 = pneg %p253
        %p460 = pneg %p277
        %p461 = pneg %p274
        %p462 = pneg %p298
        %p463 = pneg %p295
        %p464 = scmp.eq.s32.totalorder %s25, 0
        // Predicated region
        $region111: #{tpu_custom_call.1} parent=101 // pred_check
          %p465 = pneg %p464
        $region112: #{tpu_custom_call.1} parent=101 // pred_check_branch
          %467 = sbr.rel (%p465) target = $region114
        $region113: #{tpu_custom_call.1} parent=101 // pred_region
          %vm468 = vcmask 257024
          %469 = vst.msk [vmem:[#allocation2] sm:$0xf] %vm468, 0.0
        $region114: #{tpu_custom_call.1} parent=101 // pred_fallthru
          _
        %p470 = scmp.lt.s32.totalorder %s25, 4
        // Predicated region
        $region115: #{tpu_custom_call.1} parent=101 // pred_check
          %p471 = pneg %p470
        $region116: #{tpu_custom_call.1} parent=101 // pred_check_branch
          %473 = sbr.rel (%p471) target = $region118
        $region117: #{tpu_custom_call.1} parent=101 // pred_region
          %v474 = vld [vmem:[#allocation2] sm:$0xf]
          %v475 = vld [vmem:[%s425] sm:$0xff]
          %v476 = vld [vmem:[%s425 + $0x8] sm:$0xff]
          %v477 = vld [vmem:[%s425 + $0x10] sm:$0xff]
          %v478 = vld [vmem:[%s425 + $0x18] sm:$0xff]
          %vm479 = vcmask 261120
          %v480 = vsel %vm479, %v475, 0.0
          %v481 = vrot.slane %v480, 4
          %v482 = vadd.f32 %v480, %v481
          %v483 = vrot.slane %v482, 2
          %v484 = vadd.f32 %v482, %v483
          %v485 = vrot.slane %v484, 1
          %v486 = vadd.f32 %v484, %v485
          %v487 = vsel %vm479, %v476, 0.0
          %v488 = vrot.slane %v487, 4
          %v489 = vadd.f32 %v487, %v488
          %v490 = vrot.slane %v489, 2
          %v491 = vadd.f32 %v489, %v490
          %v492 = vrot.slane %v491, 1
          %v493 = vadd.f32 %v491, %v492
          %v494 = vsel %vm479, %v477, 0.0
          %v495 = vrot.slane %v494, 4
          %v496 = vadd.f32 %v494, %v495
          %v497 = vrot.slane %v496, 2
          %v498 = vadd.f32 %v496, %v497
          %v499 = vrot.slane %v498, 1
          %v500 = vadd.f32 %v498, %v499
          %v501 = vsel %vm479, %v478, 0.0
          %v502 = vrot.slane %v501, 4
          %v503 = vadd.f32 %v501, %v502
          %v504 = vrot.slane %v503, 2
          %v505 = vadd.f32 %v503, %v504
          %v506 = vrot.slane %v505, 1
          %v507 = vadd.f32 %v505, %v506
          %vm512 = vcmask 1041409
          %v513 = vsel %vm512, %v493, %v486
          %vm514 = vcmask 1042434
          %v515 = vsel %vm514, %v500, %v513
          %vm516 = vcmask 1043459
          %v517 = vsel %vm516, %v507, %v515
          %v519 = vadd.f32 %v474, %v517
          %vm520 = vcmask 257024
          %521 = vst.msk [vmem:[#allocation2] sm:$0xf] %vm520, %v519
        $region118: #{tpu_custom_call.1} parent=101 // pred_fallthru
          _
        %p522 = scmp.eq.s32.totalorder %s25, 4
        // Predicated region
        $region119: #{tpu_custom_call.1} parent=101 // pred_check
          %p523 = pneg %p522
        $region120: #{tpu_custom_call.1} parent=101 // pred_check_branch
          %525 = sbr.rel (%p523) target = $region122
        $region121: #{tpu_custom_call.1} parent=101 // pred_region
          %v526 = vlaneseq
          %v527 = vshrl.u32 %v526, 7
          %vm528 = vcmp.lt.s32.totalorder %v527, 5
          %v529 = vld [vmem:[%s425] sm:$0xff]
          %v530 = vld [vmem:[%s425 + $0x8] sm:$0xff]
          %v531 = vld [vmem:[%s425 + $0x10] sm:$0xff]
          %v532 = vld [vmem:[%s425 + $0x18] sm:$0xff]
          %v533 = vsel %vm528, 1, 0
          %vm534 = vcmp.eq.s32.totalorder %v533, 1
          %v535 = vsel %vm534, %v529, 0.0
          %v536 = vsel %vm534, %v530, 0.0
          %v537 = vsel %vm534, %v531, 0.0
          %v538 = vsel %vm534, %v532, 0.0
          %v539 = vld [vmem:[#allocation2] sm:$0xf]
          %vm540 = vcmask 261120
          %v541 = vsel %vm540, %v535, 0.0
          %v542 = vrot.slane %v541, 4
          %v543 = vadd.f32 %v541, %v542
          %v544 = vrot.slane %v543, 2
          %v545 = vadd.f32 %v543, %v544
          %v546 = vrot.slane %v545, 1
          %v547 = vadd.f32 %v545, %v546
          %v548 = vsel %vm540, %v536, 0.0
          %v549 = vrot.slane %v548, 4
          %v550 = vadd.f32 %v548, %v549
          %v551 = vrot.slane %v550, 2
          %v552 = vadd.f32 %v550, %v551
          %v553 = vrot.slane %v552, 1
          %v554 = vadd.f32 %v552, %v553
          %v555 = vsel %vm540, %v537, 0.0
          %v556 = vrot.slane %v555, 4
          %v557 = vadd.f32 %v555, %v556
          %v558 = vrot.slane %v557, 2
          %v559 = vadd.f32 %v557, %v558
          %v560 = vrot.slane %v559, 1
          %v561 = vadd.f32 %v559, %v560
          %v562 = vsel %vm540, %v538, 0.0
          %v563 = vrot.slane %v562, 4
          %v564 = vadd.f32 %v562, %v563
          %v565 = vrot.slane %v564, 2
          %v566 = vadd.f32 %v564, %v565
          %v567 = vrot.slane %v566, 1
          %v568 = vadd.f32 %v566, %v567
          %vm573 = vcmask 1041409
          %v574 = vsel %vm573, %v554, %v547
          %vm575 = vcmask 1042434
          %v576 = vsel %vm575, %v561, %v574
          %vm577 = vcmask 1043459
          %v578 = vsel %vm577, %v568, %v576
          %v580 = vadd.f32 %v539, %v578
          %vm581 = vcmask 257024
          %582 = vst.msk [vmem:[#allocation2] sm:$0xf] %vm581, %v580
          %v583 = vld [vmem:[#allocation2] sm:$0xf]
          %v584 = vld [vmem:[#allocation4] sm:$0xff]
          %v585 = vld [vmem:[#allocation4 + $0x8] sm:$0xff]
          %v586 = vld [vmem:[#allocation4 + $0x10] sm:$0xff]
          %v587 = vld [vmem:[#allocation4 + $0x18] sm:$0xff]
          %v588 = vld [vmem:[#allocation4 + $0x20] sm:$0xff]
          %v589 = vld [vmem:[#allocation4 + $0x28] sm:$0xff]
          %v590 = vld [vmem:[#allocation4 + $0x30] sm:$0xff]
          %v591 = vld [vmem:[#allocation4 + $0x38] sm:$0xff]
          %v592 = vld [vmem:[%s3] sm:$0x3]
          %v594 = vperm.slane %v592, 0
          %v595 = vperm.slane %v592, 1
          %v599 = vsel %vm540, %v583, 0
          %601 = vmatpush.msra.mxu0 0.0
          %602 = vmatpush.msra.mxu0 0.0
          %603 = vmatpush.msra.mxu0 0.0
          %604 = vmatpush.msra.mxu0 0.0
          %605 = vmatpush.msra.mxu0 0.0
          %606 = vmatpush.msra.mxu0 0.0
          %607 = vmatpush.msra.mxu0 0.0
          %608 = vmatpush.msra.mxu0 0.0
          %609 = vmatpush.msra.mxu0 0.0
          %610 = vmatpush.msra.mxu0 0.0
          %611 = vmatpush.msra.mxu0 0.0
          %612 = vmatpush.msra.mxu0 0.0
          %613 = vmatpush.msra.mxu0 %v590
          %614 = vmatpush.msra.mxu0 %v588
          %615 = vmatpush.msra.mxu0 %v586
          %616 = vmatpush.msra.mxu0 %v584
          %617 = vmatmul.f32.gmra.mxu0 %v599
          %v618 = vpop.f32.mrf.mxu0
          %v619 = vadd.f32 %v594, %v618
          %620 = vdwg.mxu0
          %621 = vmatpush.msra.mxu0 0.0
          %622 = vmatpush.msra.mxu0 0.0
          %623 = vmatpush.msra.mxu0 0.0
          %624 = vmatpush.msra.mxu0 0.0
          %625 = vmatpush.msra.mxu0 0.0
          %626 = vmatpush.msra.mxu0 0.0
          %627 = vmatpush.msra.mxu0 0.0
          %628 = vmatpush.msra.mxu0 0.0
          %629 = vmatpush.msra.mxu0 0.0
          %630 = vmatpush.msra.mxu0 0.0
          %631 = vmatpush.msra.mxu0 0.0
          %632 = vmatpush.msra.mxu0 0.0
          %633 = vmatpush.msra.mxu0 %v591
          %634 = vmatpush.msra.mxu0 %v589
          %635 = vmatpush.msra.mxu0 %v587
          %636 = vmatpush.msra.mxu0 %v585
          %637 = vmatmul.f32.gmra.mxu0 %v599
          %v638 = vpop.f32.mrf.mxu0
          %v639 = vadd.f32 %v595, %v638
          %640 = vdwg.mxu0
          %v641 = vld [vmem:[%s4] sm:$0x3]
          %v642 = vld [vmem:[%s5] sm:$0x3]
          %vm643 = vcmask 1043456
          %v644 = vsel %vm643, %v619, 0.0
          %v645 = vrot.slane %v644, 4
          %v646 = vadd.f32 %v644, %v645
          %v647 = vrot.slane %v646, 2
          %v648 = vadd.f32 %v646, %v647
          %v649 = vrot.slane %v648, 1
          %v650 = vadd.f32 %v648, %v649
          %v651 = vsel %vm643, %v639, 0.0
          %v652 = vrot.slane %v651, 4
          %v653 = vadd.f32 %v651, %v652
          %v654 = vrot.slane %v653, 2
          %v655 = vadd.f32 %v653, %v654
          %v656 = vrot.slane %v655, 1
          %v657 = vadd.f32 %v655, %v656
          %v658 = vrcp.pop 4.0
          %v659 = vmul.f32 4.0, %v658
          %v660 = vsub.f32 1.0, %v659
          %v661 = vmul.f32 %v658, %v660
          %v662 = vadd.f32 %v658, %v661
          %vm663 = vweird.f32 %v658
          %v664 = vsel %vm663, %v658, %v662
          %v665 = vmul.f32 %v650, %v664
          %v666 = vmul.f32 %v657, %v664
          %v667 = vsub.f32 %v619, %v665
          %v668 = vsub.f32 %v639, %v666
          %v669 = vmul.f32 %v667, %v667
          %v670 = vmul.f32 %v668, %v668
          %v671 = vsel %vm643, %v669, 0.0
          %v672 = vrot.slane %v671, 4
          %v673 = vadd.f32 %v671, %v672
          %v674 = vrot.slane %v673, 2
          %v675 = vadd.f32 %v673, %v674
          %v676 = vrot.slane %v675, 1
          %v677 = vadd.f32 %v675, %v676
          %v678 = vsel %vm643, %v670, 0.0
          %v679 = vrot.slane %v678, 4
          %v680 = vadd.f32 %v678, %v679
          %v681 = vrot.slane %v680, 2
          %v682 = vadd.f32 %v680, %v681
          %v683 = vrot.slane %v682, 1
          %v684 = vadd.f32 %v682, %v683
          %v685 = vmul.f32 %v677, %v664
          %v686 = vmul.f32 %v684, %v664
          %v688 = vperm.slane %v641, 0
          %v689 = vperm.slane %v641, 1
          %v692 = vmul.f32 %v688, %v667
          %v693 = vmul.f32 %v689, %v668
          %v694 = vadd.f32 %v685, 1e-05
          %v695 = vadd.f32 %v686, 1e-05
          %v696 = vrsqrt.pop %v694
          %v697 = vmul.f32 %v696, %v694
          %v698 = vmul.f32 %v697, %v696
          %v699 = vmul.f32 0.5, %v698
          %v700 = vsub.f32 1.5, %v699
          %v701 = vmul.f32 %v696, %v700
          %vm702 = vweird.f32 %v694
          %vm703 = vweird.f32 %v696
          %vm704 = vmor %vm702, %vm703
          %v705 = vsel %vm704, %v696, %v701
          %v706 = vrsqrt.pop %v695
          %v707 = vmul.f32 %v706, %v695
          %v708 = vmul.f32 %v707, %v706
          %v709 = vmul.f32 0.5, %v708
          %v710 = vsub.f32 1.5, %v709
          %v711 = vmul.f32 %v706, %v710
          %vm712 = vweird.f32 %v695
          %vm713 = vweird.f32 %v706
          %vm714 = vmor %vm712, %vm713
          %v715 = vsel %vm714, %v706, %v711
          %v716 = vmul.f32 %v692, %v705
          %v717 = vmul.f32 %v693, %v715
          %v719 = vperm.slane %v642, 0
          %v720 = vperm.slane %v642, 1
          %v723 = vadd.f32 %v716, %v719
          %v724 = vadd.f32 %v717, %v720
          %v725 = vmax.f32 %v723, 0.0
          %v726 = vmax.f32 %v724, 0.0
          %v727 = vld [vmem:[%s6] sm:$0xff]
          %v728 = vld [vmem:[%s6 + $0x8] sm:$0xff]
          %v729 = vld [vmem:[%s6 + $0x10] sm:$0xff]
          %v730 = vld [vmem:[%s6 + $0x18] sm:$0xff]
          %v731 = vld [vmem:[%s6 + $0x20] sm:$0xff]
          %v732 = vld [vmem:[%s6 + $0x28] sm:$0xff]
          %v733 = vld [vmem:[%s6 + $0x30] sm:$0xff]
          %v734 = vld [vmem:[%s6 + $0x38] sm:$0xff]
          %v735 = vld [vmem:[%s6 + $0x40] sm:$0xff]
          %v736 = vld [vmem:[%s6 + $0x48] sm:$0xff]
          %v737 = vld [vmem:[%s6 + $0x50] sm:$0xff]
          %v738 = vld [vmem:[%s6 + $0x58] sm:$0xff]
          %v739 = vld [vmem:[%s6 + $0x60] sm:$0xff]
          %v740 = vld [vmem:[%s6 + $0x68] sm:$0xff]
          %v741 = vld [vmem:[%s6 + $0x70] sm:$0xff]
          %v742 = vld [vmem:[%s6 + $0x78] sm:$0xff]
          %v743 = vld [vmem:[%s6 + $0x80] sm:$0xff]
          %v744 = vld [vmem:[%s6 + $0x88] sm:$0xff]
          %v745 = vld [vmem:[%s6 + $0x90] sm:$0xff]
          %v746 = vld [vmem:[%s6 + $0x98] sm:$0xff]
          %v747 = vld [vmem:[%s6 + $0xa0] sm:$0xff]
          %v748 = vld [vmem:[%s6 + $0xa8] sm:$0xff]
          %v749 = vld [vmem:[%s6 + $0xb0] sm:$0xff]
          %v750 = vld [vmem:[%s6 + $0xb8] sm:$0xff]
          %v751 = vld [vmem:[%s6 + $0xc0] sm:$0xff]
          %v752 = vld [vmem:[%s6 + $0xc8] sm:$0xff]
          %v753 = vld [vmem:[%s6 + $0xd0] sm:$0xff]
          %v754 = vld [vmem:[%s6 + $0xd8] sm:$0xff]
          %v755 = vld [vmem:[%s6 + $0xe0] sm:$0xff]
          %v756 = vld [vmem:[%s6 + $0xe8] sm:$0xff]
          %v757 = vld [vmem:[%s6 + $0xf0] sm:$0xff]
          %v758 = vld [vmem:[%s6 + $0xf8] sm:$0xff]
          %v759 = vld [vmem:[%s6 + $0x100] sm:$0xff]
          %v760 = vld [vmem:[%s6 + $0x108] sm:$0xff]
          %v761 = vld [vmem:[%s6 + $0x110] sm:$0xff]
          %v762 = vld [vmem:[%s6 + $0x118] sm:$0xff]
          %v763 = vld [vmem:[%s6 + $0x120] sm:$0xff]
          %v764 = vld [vmem:[%s6 + $0x128] sm:$0xff]
          %v765 = vld [vmem:[%s6 + $0x130] sm:$0xff]
          %v766 = vld [vmem:[%s6 + $0x138] sm:$0xff]
          %v767 = vld [vmem:[%s6 + $0x140] sm:$0xff]
          %v768 = vld [vmem:[%s6 + $0x148] sm:$0xff]
          %v769 = vld [vmem:[%s6 + $0x150] sm:$0xff]
          %v770 = vld [vmem:[%s6 + $0x158] sm:$0xff]
          %v771 = vld [vmem:[%s6 + $0x160] sm:$0xff]
          %v772 = vld [vmem:[%s6 + $0x168] sm:$0xff]
          %v773 = vld [vmem:[%s6 + $0x170] sm:$0xff]
          %v774 = vld [vmem:[%s6 + $0x178] sm:$0xff]
          %v775 = vld [vmem:[%s6 + $0x180] sm:$0xff]
          %v776 = vld [vmem:[%s6 + $0x188] sm:$0xff]
          %v777 = vld [vmem:[%s6 + $0x190] sm:$0xff]
          %v778 = vld [vmem:[%s6 + $0x198] sm:$0xff]
          %v779 = vld [vmem:[%s6 + $0x1a0] sm:$0xff]
          %v780 = vld [vmem:[%s6 + $0x1a8] sm:$0xff]
          %v781 = vld [vmem:[%s6 + $0x1b0] sm:$0xff]
          %v782 = vld [vmem:[%s6 + $0x1b8] sm:$0xff]
          %v783 = vld [vmem:[%s6 + $0x1c0] sm:$0xff]
          %v784 = vld [vmem:[%s6 + $0x1c8] sm:$0xff]
          %v785 = vld [vmem:[%s6 + $0x1d0] sm:$0xff]
          %v786 = vld [vmem:[%s6 + $0x1d8] sm:$0xff]
          %v787 = vld [vmem:[%s6 + $0x1e0] sm:$0xff]
          %v788 = vld [vmem:[%s6 + $0x1e8] sm:$0xff]
          %v789 = vld [vmem:[%s6 + $0x1f0] sm:$0xff]
          %v790 = vld [vmem:[%s6 + $0x1f8] sm:$0xff]
          %v791 = vld [vmem:[%s7] sm:$0x3]
          %v793 = vperm.slane %v791, 0
          %v794 = vperm.slane %v791, 1
          %797 = vmatpush.msra.mxu0 %v757
          %798 = vmatpush.msra.mxu0 %v755
          %799 = vmatpush.msra.mxu0 %v753
          %800 = vmatpush.msra.mxu0 %v751
          %801 = vmatpush.msra.mxu0 %v749
          %802 = vmatpush.msra.mxu0 %v747
          %803 = vmatpush.msra.mxu0 %v745
          %804 = vmatpush.msra.mxu0 %v743
          %805 = vmatpush.msra.mxu0 %v741
          %806 = vmatpush.msra.mxu0 %v739
          %807 = vmatpush.msra.mxu0 %v737
          %808 = vmatpush.msra.mxu0 %v735
          %809 = vmatpush.msra.mxu0 %v733
          %810 = vmatpush.msra.mxu0 %v731
          %811 = vmatpush.msra.mxu0 %v729
          %812 = vmatpush.msra.mxu0 %v727
          %813 = vmatmul.f32.gmra.mxu0 %v725
          %v814 = vpop.f32.mrf.mxu0
          %v815 = vadd.f32 %v793, %v814
          %816 = vdwg.mxu0
          %817 = vmatpush.msra.mxu0 %v789
          %818 = vmatpush.msra.mxu0 %v787
          %819 = vmatpush.msra.mxu0 %v785
          %820 = vmatpush.msra.mxu0 %v783
          %821 = vmatpush.msra.mxu0 %v781
          %822 = vmatpush.msra.mxu0 %v779
          %823 = vmatpush.msra.mxu0 %v777
          %824 = vmatpush.msra.mxu0 %v775
          %825 = vmatpush.msra.mxu0 %v773
          %826 = vmatpush.msra.mxu0 %v771
          %827 = vmatpush.msra.mxu0 %v769
          %828 = vmatpush.msra.mxu0 %v767
          %829 = vmatpush.msra.mxu0 %v765
          %830 = vmatpush.msra.mxu0 %v763
          %831 = vmatpush.msra.mxu0 %v761
          %832 = vmatpush.msra.mxu0 %v759
          %833 = vmatmul.f32.gmra.mxu0 %v726
          %v834 = vpop.f32.mrf.mxu0
          %v835 = vadd.f32 %v815, %v834
          %836 = vdwg.mxu0
          %837 = vmatpush.msra.mxu0 %v758
          %838 = vmatpush.msra.mxu0 %v756
          %839 = vmatpush.msra.mxu0 %v754
          %840 = vmatpush.msra.mxu0 %v752
          %841 = vmatpush.msra.mxu0 %v750
          %842 = vmatpush.msra.mxu0 %v748
          %843 = vmatpush.msra.mxu0 %v746
          %844 = vmatpush.msra.mxu0 %v744
          %845 = vmatpush.msra.mxu0 %v742
          %846 = vmatpush.msra.mxu0 %v740
          %847 = vmatpush.msra.mxu0 %v738
          %848 = vmatpush.msra.mxu0 %v736
          %849 = vmatpush.msra.mxu0 %v734
          %850 = vmatpush.msra.mxu0 %v732
          %851 = vmatpush.msra.mxu0 %v730
          %852 = vmatpush.msra.mxu0 %v728
          %853 = vmatmul.f32.gmra.mxu0 %v725
          %v854 = vpop.f32.mrf.mxu0
          %v855 = vadd.f32 %v794, %v854
          %856 = vdwg.mxu0
          %857 = vmatpush.msra.mxu0 %v790
          %858 = vmatpush.msra.mxu0 %v788
          %859 = vmatpush.msra.mxu0 %v786
          %860 = vmatpush.msra.mxu0 %v784
          %861 = vmatpush.msra.mxu0 %v782
          %862 = vmatpush.msra.mxu0 %v780
          %863 = vmatpush.msra.mxu0 %v778
          %864 = vmatpush.msra.mxu0 %v776
          %865 = vmatpush.msra.mxu0 %v774
          %866 = vmatpush.msra.mxu0 %v772
          %867 = vmatpush.msra.mxu0 %v770
          %868 = vmatpush.msra.mxu0 %v768
          %869 = vmatpush.msra.mxu0 %v766
          %870 = vmatpush.msra.mxu0 %v764
          %871 = vmatpush.msra.mxu0 %v762
          %872 = vmatpush.msra.mxu0 %v760
          %873 = vmatmul.f32.gmra.mxu0 %v726
          %v874 = vpop.f32.mrf.mxu0
          %v875 = vadd.f32 %v855, %v874
          %876 = vdwg.mxu0
          %v877 = vld [vmem:[%s8] sm:$0x3]
          %v878 = vld [vmem:[%s9] sm:$0x3]
          %v879 = vsel %vm643, %v835, 0.0
          %v880 = vrot.slane %v879, 4
          %v881 = vadd.f32 %v879, %v880
          %v882 = vrot.slane %v881, 2
          %v883 = vadd.f32 %v881, %v882
          %v884 = vrot.slane %v883, 1
          %v885 = vadd.f32 %v883, %v884
          %v886 = vsel %vm643, %v875, 0.0
          %v887 = vrot.slane %v886, 4
          %v888 = vadd.f32 %v886, %v887
          %v889 = vrot.slane %v888, 2
          %v890 = vadd.f32 %v888, %v889
          %v891 = vrot.slane %v890, 1
          %v892 = vadd.f32 %v890, %v891
          %v893 = vmul.f32 %v885, %v664
          %v894 = vmul.f32 %v892, %v664
          %v895 = vsub.f32 %v835, %v893
          %v896 = vsub.f32 %v875, %v894
          %v897 = vmul.f32 %v895, %v895
          %v898 = vmul.f32 %v896, %v896
          %v899 = vsel %vm643, %v897, 0.0
          %v900 = vrot.slane %v899, 4
          %v901 = vadd.f32 %v899, %v900
          %v902 = vrot.slane %v901, 2
          %v903 = vadd.f32 %v901, %v902
          %v904 = vrot.slane %v903, 1
          %v905 = vadd.f32 %v903, %v904
          %v906 = vsel %vm643, %v898, 0.0
          %v907 = vrot.slane %v906, 4
          %v908 = vadd.f32 %v906, %v907
          %v909 = vrot.slane %v908, 2
          %v910 = vadd.f32 %v908, %v909
          %v911 = vrot.slane %v910, 1
          %v912 = vadd.f32 %v910, %v911
          %v913 = vmul.f32 %v905, %v664
          %v914 = vmul.f32 %v912, %v664
          %v916 = vperm.slane %v877, 0
          %v917 = vperm.slane %v877, 1
          %v920 = vmul.f32 %v916, %v895
          %v921 = vmul.f32 %v917, %v896
          %v922 = vadd.f32 %v913, 1e-05
          %v923 = vadd.f32 %v914, 1e-05
          %v924 = vrsqrt.pop %v922
          %v925 = vmul.f32 %v924, %v922
          %v926 = vmul.f32 %v925, %v924
          %v927 = vmul.f32 0.5, %v926
          %v928 = vsub.f32 1.5, %v927
          %v929 = vmul.f32 %v924, %v928
          %vm930 = vweird.f32 %v922
          %vm931 = vweird.f32 %v924
          %vm932 = vmor %vm930, %vm931
          %v933 = vsel %vm932, %v924, %v929
          %v934 = vrsqrt.pop %v923
          %v935 = vmul.f32 %v934, %v923
          %v936 = vmul.f32 %v935, %v934
          %v937 = vmul.f32 0.5, %v936
          %v938 = vsub.f32 1.5, %v937
          %v939 = vmul.f32 %v934, %v938
          %vm940 = vweird.f32 %v923
          %vm941 = vweird.f32 %v934
          %vm942 = vmor %vm940, %vm941
          %v943 = vsel %vm942, %v934, %v939
          %v944 = vmul.f32 %v920, %v933
          %v945 = vmul.f32 %v921, %v943
          %v947 = vperm.slane %v878, 0
          %v948 = vperm.slane %v878, 1
          %v951 = vadd.f32 %v944, %v947
          %v952 = vadd.f32 %v945, %v948
          %v953 = vmax.f32 %v951, 0.0
          %v954 = vmax.f32 %v952, 0.0
          %v955 = vld [vmem:[%s10] sm:$0xff]
          %v956 = vld [vmem:[%s10 + $0x8] sm:$0xff]
          %v957 = vld [vmem:[%s10 + $0x10] sm:$0xff]
          %v958 = vld [vmem:[%s10 + $0x18] sm:$0xff]
          %v959 = vld [vmem:[%s10 + $0x20] sm:$0xff]
          %v960 = vld [vmem:[%s10 + $0x28] sm:$0xff]
          %v961 = vld [vmem:[%s10 + $0x30] sm:$0xff]
          %v962 = vld [vmem:[%s10 + $0x38] sm:$0xff]
          %v963 = vld [vmem:[%s10 + $0x40] sm:$0xff]
          %v964 = vld [vmem:[%s10 + $0x48] sm:$0xff]
          %v965 = vld [vmem:[%s10 + $0x50] sm:$0xff]
          %v966 = vld [vmem:[%s10 + $0x58] sm:$0xff]
          %v967 = vld [vmem:[%s10 + $0x60] sm:$0xff]
          %v968 = vld [vmem:[%s10 + $0x68] sm:$0xff]
          %v969 = vld [vmem:[%s10 + $0x70] sm:$0xff]
          %v970 = vld [vmem:[%s10 + $0x78] sm:$0xff]
          %v971 = vld [vmem:[%s10 + $0x80] sm:$0xff]
          %v972 = vld [vmem:[%s10 + $0x88] sm:$0xff]
          %v973 = vld [vmem:[%s10 + $0x90] sm:$0xff]
          %v974 = vld [vmem:[%s10 + $0x98] sm:$0xff]
          %v975 = vld [vmem:[%s10 + $0xa0] sm:$0xff]
          %v976 = vld [vmem:[%s10 + $0xa8] sm:$0xff]
          %v977 = vld [vmem:[%s10 + $0xb0] sm:$0xff]
          %v978 = vld [vmem:[%s10 + $0xb8] sm:$0xff]
          %v979 = vld [vmem:[%s10 + $0xc0] sm:$0xff]
          %v980 = vld [vmem:[%s10 + $0xc8] sm:$0xff]
          %v981 = vld [vmem:[%s10 + $0xd0] sm:$0xff]
          %v982 = vld [vmem:[%s10 + $0xd8] sm:$0xff]
          %v983 = vld [vmem:[%s10 + $0xe0] sm:$0xff]
          %v984 = vld [vmem:[%s10 + $0xe8] sm:$0xff]
          %v985 = vld [vmem:[%s10 + $0xf0] sm:$0xff]
          %v986 = vld [vmem:[%s10 + $0xf8] sm:$0xff]
          %v987 = vld [vmem:[%s11] sm:$0x1]
          %v989 = vperm.slane %v987, 0
          %991 = vmatpush.msra.mxu0 %v970
          %992 = vmatpush.msra.mxu0 %v969
          %993 = vmatpush.msra.mxu0 %v968
          %994 = vmatpush.msra.mxu0 %v967
          %995 = vmatpush.msra.mxu0 %v966
          %996 = vmatpush.msra.mxu0 %v965
          %997 = vmatpush.msra.mxu0 %v964
          %998 = vmatpush.msra.mxu0 %v963
          %999 = vmatpush.msra.mxu0 %v962
          %1000 = vmatpush.msra.mxu0 %v961
          %1001 = vmatpush.msra.mxu0 %v960
          %1002 = vmatpush.msra.mxu0 %v959
          %1003 = vmatpush.msra.mxu0 %v958
          %1004 = vmatpush.msra.mxu0 %v957
          %1005 = vmatpush.msra.mxu0 %v956
          %1006 = vmatpush.msra.mxu0 %v955
          %1007 = vmatmul.f32.gmra.mxu0 %v953
          %v1008 = vpop.f32.mrf.mxu0
          %v1009 = vadd.f32 %v989, %v1008
          %1010 = vdwg.mxu0
          %1011 = vmatpush.msra.mxu0 %v986
          %1012 = vmatpush.msra.mxu0 %v985
          %1013 = vmatpush.msra.mxu0 %v984
          %1014 = vmatpush.msra.mxu0 %v983
          %1015 = vmatpush.msra.mxu0 %v982
          %1016 = vmatpush.msra.mxu0 %v981
          %1017 = vmatpush.msra.mxu0 %v980
          %1018 = vmatpush.msra.mxu0 %v979
          %1019 = vmatpush.msra.mxu0 %v978
          %1020 = vmatpush.msra.mxu0 %v977
          %1021 = vmatpush.msra.mxu0 %v976
          %1022 = vmatpush.msra.mxu0 %v975
          %1023 = vmatpush.msra.mxu0 %v974
          %1024 = vmatpush.msra.mxu0 %v973
          %1025 = vmatpush.msra.mxu0 %v972
          %1026 = vmatpush.msra.mxu0 %v971
          %1027 = vmatmul.f32.gmra.mxu0 %v954
          %v1028 = vpop.f32.mrf.mxu0
          %v1029 = vadd.f32 %v1009, %v1028
          %1030 = vdwg.mxu0
          %v1031 = vld [vmem:[%s1] sm:$0xf]
          %v1032 = vsub.f32 %v1029, %v1031
          %v1033 = vmul.f32 %v1032, %v1032
          %vm1034 = vcmask 60416
          %v1035 = vsel %vm1034, %v1033, 0.0
          %1036 = vadd.xlane.f32.xlu0 %v1035
          %v1037 = vpop.xlane.xlu0 %1036
          %v1038 = vrot.slane %v1037, 4
          %v1039 = vadd.f32 %v1037, %v1038
          %v1040 = vrot.slane %v1039, 2
          %v1041 = vadd.f32 %v1039, %v1040
          %v1042 = vrot.slane %v1041, 1
          %v1043 = vadd.f32 %v1041, %v1042
          %s1044 = vtos %v1043
          %v1045 = vrcp.pop 32.0
          %v1046 = vmul.f32 32.0, %v1045
          %v1047 = vsub.f32 1.0, %v1046
          %v1048 = vmul.f32 %v1045, %v1047
          %v1049 = vadd.f32 %v1045, %v1048
          %vm1050 = vweird.f32 %v1045
          %v1051 = vsel %vm1050, %v1045, %v1049
          %s1052 = vtos %v1051
          %s1053 = smul.f32 %s1044, %s1052
          %s1054 = scalar_lea.smem [#allocation7], 0
          %1055 = sst [smem:[%s1054]] %s1053
        $region122: #{tpu_custom_call.1} parent=101 // pred_fallthru
          _
        // Predicated region
        $region123: #{tpu_custom_call.1} parent=101 // pred_check
          %p1056 = pneg %p295
        $region124: #{tpu_custom_call.1} parent=101 // pred_check_branch
          %1058 = sbr.rel (%p1056) target = $region126
        $region125: #{tpu_custom_call.1} parent=101 // pred_region
          %1060 = vsyncadd [#allocation6], 0
          %s1062 = sshll.u32 %s12, 4
          %s1063 = int_to_ptr.hbm [resolvable:$true] %s1062
          %1065 = dma.smem_to_hbm [#allocation7], 16, %s1063, [#allocation6]
        $region126: #{tpu_custom_call.1} parent=101 // pred_fallthru
          _
        // Predicated region
        $region127: #{tpu_custom_call.1} parent=101 // pred_check
          %p1066 = pneg %p295
        $region128: #{tpu_custom_call.1} parent=101 // pred_check_branch
          %1068 = sbr.rel (%p1066) target = $region130
        $region129: #{tpu_custom_call.1} parent=101 // pred_region
          %1070 = dma.done [#allocation6], 16
        $region130: #{tpu_custom_call.1} parent=101 // pred_fallthru
          _
        %1071 = sfence
      $region102: #{tpu_custom_call.1} parent=5 // pred_fallthru
        _
      %p1072 = scmp.le.s32.totalorder 2, %s20
      // Predicated region
      $region131: #{tpu_custom_call.1} parent=5 // pred_check
        %p1073 = pneg %p1072
      $region132: #{tpu_custom_call.1} parent=5 // pred_check_branch
        %1075 = sbr.rel (%p1073) target = $region134
      $region133: #{tpu_custom_call.1} parent=5 // pred_region
        %s1076 = ssub.s32 %s20, 2
      $region134: #{tpu_custom_call.1} parent=5 // pred_fallthru
        _
    $region6: #{tpu_custom_call.1} parent=1 // loop_footer
      %s24 = sadd.s32 1, %s20
    $region7: #{tpu_custom_call.1} parent=1 // loop_footer_branch
      %19 = sbr.rel target = $region3
    $region8: #{tpu_custom_call.1} parent=1 // loop_exit
      _
    %1077 = vsyncpa [#allocation5], 1
    %s1078 = scalar_lea.sflag [#allocation5], 1
    %1079 = vsyncpa %s1078, 1
    %1080 = vsyncpa [#allocation6], 1
    %s1081 = scalar_lea.sflag [#allocation6], 1
    %1082 = vsyncpa %s1081, 1

</llo_original>
